<compile_context>
chip_gen: v5e
topology: v5e:2x2
jax: 0.10.0
libtpu: 0.0.40
codegen_flags: <defaults>
</compile_context>

<pallas_src>
import functools

import jax
import jax.numpy as jnp
from jax.experimental import pallas as pl
from jax.experimental.pallas import tpu as pltpu


# ----------------------------- fused Pallas kernel ---------------------------

def _fused_kernel(coef_ref, x_ref, o_ref, *, clip):
    # coef_ref: (tr, 2) — column 0 = scale a, column 1 = bias b (per row/channel)
    a = coef_ref[:, 0:1]
    b = coef_ref[:, 1:2]
    y = x_ref[...].astype(jnp.float32) * a + b
    if clip:
        y = jnp.clip(y, 0.0, 1.0)
    o_ref[...] = y.astype(o_ref.dtype)


_ROW_TILE_CAP = 512    # sublane-dim cap (multiple of 8)
_LANE_TILE_CAP = 4096  # lane-dim cap   (multiple of 128) -> 8 MiB f32 tile


def _pick_tile(dim, unit, cap):
    """Tile size: full dim if it already fits, else the aligned cap.
    Never requires divisibility — ragged edges are handled by cdiv grid +
    Pallas edge-block masking."""
    if dim <= cap:
        return dim            # full extent is always a legal block shape
    return (cap // unit) * unit  # aligned cap (caps are pre-aligned anyway)


def _maybe_split_for_cores(R, L, tr, tl):
    """Ensure at least 2 grid blocks so v7x's second TensorCore gets work.
    No-op on v5e/v6e (1 TC) and when the shape can't be split legally."""
    if pl.cdiv(R, tr) * pl.cdiv(L, tl) >= 2:
        return tr, tl
    if L >= 256:
        half = ((L + 1) // 2 + 127) // 128 * 128   # multiple of 128
        return tr, half
    if R >= 16:
        half = ((R + 1) // 2 + 7) // 8 * 8         # multiple of 8
        return half, tl
    return tr, tl


def _vmem_limit_bytes():
    """Generation-aware scoped-VMEM budget with a safe fallback."""
    cap = 64 << 20  # conservative default (v7x physical VMEM per TC)
    try:
        info = pltpu.get_tpu_info()
        cap = int(getattr(info, "vmem_capacity_bytes", cap))
    except Exception:
        pass
    # Leave ~16 MiB headroom for Mosaic internal scratch; never exceed 64 MiB
    # (plenty for 8 MiB tiles, keeps v5e/v6e well inside physical VMEM).
    return max(32 << 20, min(cap - (16 << 20), 64 << 20))


def _fused_affine_clip(img, a_c, b_c, *, clip, out_dtype=None, donate=False):
    """y = (clip)(x * a[c] + b[c]) over an NCHW image with one pallas_call."""
    N, C, H, W = img.shape
    R, L = N * C, H * W
    out_dtype = img.dtype if out_dtype is None else out_dtype

    # Lane-dense 2D view: row r corresponds to (n, c) with c = r % C.
    x2 = img.reshape(R, L)
    coef = jnp.stack(
        [jnp.tile(a_c.astype(jnp.float32), N),
         jnp.tile(b_c.astype(jnp.float32), N)],
        axis=1,
    )  # (R, 2)

    tr = _pick_tile(R, 8, _ROW_TILE_CAP)
    tl = _pick_tile(L, 128, _LANE_TILE_CAP)
    tr, tl = _maybe_split_for_cores(R, L, tr, tl)
    grid = (pl.cdiv(R, tr), pl.cdiv(L, tl))

    x_spec = pl.BlockSpec((tr, tl), lambda i, j: (i, j))
    c_spec = pl.BlockSpec((tr, 2), lambda i, j: (i, 0))

    # Buffer donation only when the caller no longer needs the input image and
    # the output dtype matches (aliasing requires identical shape/dtype).
    aliases = {1: 0} if (donate and out_dtype == img.dtype) else {}

    out2 = pl.pallas_call(
        functools.partial(_fused_kernel, clip=clip),
        out_shape=jax.ShapeDtypeStruct((R, L), out_dtype),
        grid=grid,
        in_specs=[c_spec, x_spec],
        out_specs=x_spec,
        input_output_aliases=aliases,
        compiler_params=pltpu.CompilerParams(
            dimension_semantics=("parallel", "parallel"),
            vmem_limit_bytes=_vmem_limit_bytes(),
        ),
        # TODO(synk): if an xprof trace on v7x shows exposed DMA between steps,
        # add pipeline_mode=pl.Buffered(3) on x_spec (measure first).
    )(coef, x2)

    return out2.reshape(N, C, H, W)


# ----------------------------- transform "specs" -----------------------------

class NormalizeT:
    """Per-channel (img - mean) / std."""

    def __init__(self, mean, std):
        self.mean = jnp.asarray(mean, jnp.float32)
        self.std = jnp.asarray(std, jnp.float32)

    def affine_coeffs(self, C):
        a = jnp.broadcast_to(1.0 / self.std, (C,))
        b = jnp.broadcast_to(-self.mean / self.std, (C,))
        return a, b

    def __call__(self, img):
        a, b = self.affine_coeffs(img.shape[1])
        return _fused_affine_clip(img, a, b, clip=False)

    def __repr__(self):
        return "NormalizeT"


class AffineT:
    """img * scale + bias (brightness / contrast style transform)."""

    def __init__(self, scale, bias):
        self.scale = float(scale)
        self.bias = float(bias)

    def affine_coeffs(self, C):
        return (jnp.full((C,), self.scale, jnp.float32),
                jnp.full((C,), self.bias, jnp.float32))

    def __call__(self, img):
        a, b = self.affine_coeffs(img.shape[1])
        return _fused_affine_clip(img, a, b, clip=False)

    def __repr__(self):
        return "AffineT"


class ClipT:
    """Clamp to [0, 1]."""

    def __call__(self, img):
        C = img.shape[1]
        return _fused_affine_clip(img, jnp.ones((C,), jnp.float32),
                                  jnp.zeros((C,), jnp.float32), clip=True)

    def __repr__(self):
        return "ClipT"


# ------------------------------- Composite -----------------------------------

class Composite:
    """JAX/Pallas equivalent of the PyTorch Composite module.

    Sequential semantics are preserved; consecutive affine transforms are
    folded analytically (a_tot = ta*a, b_tot = ta*b + tb) — mathematically
    identical, f32 rounding differs negligibly (< 1e-5) from applying them
    one-by-one — and flushed as a single fused FMA(+clip) Pallas kernel at
    each ClipT or at the end of the list.

    NOTE: assumes floating-point images (as the reference transforms do).
    # TODO(synk): integer (e.g. uint8) images would need a dequant/requant path.
    """

    def __init__(self, transforms):
        self.transforms = list(transforms)

    def __call__(self, img, *, out_dtype=None, donate=False):
        C = img.shape[1]
        a = jnp.ones((C,), jnp.float32)
        b = jnp.zeros((C,), jnp.float32)
        pending = False
        n_clips = sum(isinstance(t, ClipT) for t in self.transforms)
        seen_clips = 0
        for t in self.transforms:
            if isinstance(t, ClipT):
                seen_clips += 1
                last = (seen_clips == n_clips) and not any(
                    not isinstance(u, ClipT)
                    for u in self.transforms[self.transforms.index(t) + 1:])
                img = _fused_affine_clip(
                    img, a, b, clip=True,
                    out_dtype=(out_dtype if last else None), donate=donate)
                a = jnp.ones((C,), jnp.float32)
                b = jnp.zeros((C,), jnp.float32)
                pending = False
            else:
                ta, tb = t.affine_coeffs(C)
                a = ta * a
                b = ta * b + tb
                pending = True
        if pending:
            img = _fused_affine_clip(img, a, b, clip=False,
                                     out_dtype=out_dtype, donate=donate)
        return img

    def __repr__(self):
        return f"Composite({self.transforms})"


# --------------------------------- main ---------------------------------------

if __name__ == "__main__":
    key = jax.random.PRNGKey(0)
    N, C, H, W = 2, 4, 16, 16
    img = jax.random.uniform(key, (N, C, H, W), dtype=jnp.float32)

    mean = jnp.array([0.485, 0.456, 0.406, 0.5], jnp.float32)
    std = jnp.array([0.229, 0.224, 0.225, 0.25], jnp.float32)

    composite = Composite([
        NormalizeT(mean, std),
        AffineT(scale=0.5, bias=0.25),
        ClipT(),
    ])

    out = composite(img)
    out = jax.block_until_ready(out)

    # Pure-JAX reference of the same sequential pipeline.
    ref = (img - mean[None, :, None, None]) / std[None, :, None, None]
    ref = ref * 0.5 + 0.25
    ref = jnp.clip(ref, 0.0, 1.0)

    assert out.shape == img.shape and out.dtype == img.dtype
    assert jnp.allclose(out, ref, atol=1e-5, rtol=1e-5)

    # Also exercise a non-clipped flush (Normalize-only composite).
    out2 = jax.block_until_ready(Composite([NormalizeT(mean, std)])(img))
    ref2 = (img - mean[None, :, None, None]) / std[None, :, None, None]
    assert jnp.allclose(out2, ref2, atol=1e-5, rtol=1e-5)

    print("KERNEL_OK")
</pallas_src>

<mosaic_0001>
module attributes {stable_mosaic.version = 11 : i64} {
  func.func @_fused_kernel(%arg0: i32, %arg1: i32, %arg2: memref<8x2xf32, #tpu.memory_space<vmem>>, %arg3: memref<8x128xf32, #tpu.memory_space<vmem>>, %arg4: memref<8x128xf32, #tpu.memory_space<vmem>>) attributes {dimension_semantics = [#tpu.dimension_semantics<parallel>, #tpu.dimension_semantics<parallel>], iteration_bounds = array<i64: 1, 2>, scalar_prefetch = 0 : i64, scratch_operands = 0 : i64, tpu.core_type = #tpu.core_type<tc>, window_params = [{transform_indices = @transform_0, window_bounds = array<i64: 8, 2>}, {transform_indices = @transform_1, window_bounds = array<i64: 8, 128>}, {transform_indices = @transform_2, window_bounds = array<i64: 8, 128>}]} {
    %c0 = arith.constant 0 : index
    %c0_0 = arith.constant 0 : index
    %0 = vector.load %arg2[%c0, %c0_0] : memref<8x2xf32, #tpu.memory_space<vmem>>, vector<8x1xf32>
    %c0_1 = arith.constant 0 : index
    %c1 = arith.constant 1 : index
    %1 = vector.load %arg2[%c0_1, %c1] : memref<8x2xf32, #tpu.memory_space<vmem>>, vector<8x1xf32>
    %c0_2 = arith.constant 0 : index
    %c0_3 = arith.constant 0 : index
    %2 = vector.load %arg3[%c0_2, %c0_3] : memref<8x128xf32, #tpu.memory_space<vmem>>, vector<8x128xf32>
    %3 = vector.broadcast %0 : vector<8x1xf32> to vector<8x128xf32>
    %4 = arith.mulf %2, %3 : vector<8x128xf32>
    %5 = vector.broadcast %1 : vector<8x1xf32> to vector<8x128xf32>
    %6 = arith.addf %4, %5 : vector<8x128xf32>
    %cst = arith.constant 0.000000e+00 : f32
    %cst_4 = arith.constant 1.000000e+00 : f32
    %7 = vector.broadcast %cst : f32 to vector<8x128xf32>
    %8 = arith.maximumf %7, %6 : vector<8x128xf32>
    %9 = vector.broadcast %cst_4 : f32 to vector<8x128xf32>
    %10 = arith.minimumf %9, %8 : vector<8x128xf32>
    %c0_5 = arith.constant 0 : index
    %c0_6 = arith.constant 0 : index
    %11 = vector.load %arg4[%c0_5, %c0_6] : memref<8x128xf32, #tpu.memory_space<vmem>>, vector<8x128xf32>
    tpu.vector_store %arg4[%c0_5, %c0_6], %10 {strides = array<i32>} : memref<8x128xf32, #tpu.memory_space<vmem>>, vector<8x128xf32>,
    return
  }
  func.func @transform_0(%arg0: i32, %arg1: i32) -> (i32, i32) {
    %c0_i32 = arith.constant 0 : i32
    %c0_i32_0 = arith.constant 0 : i32
    return %arg0, %c0_i32 : i32, i32
  }
  func.func @transform_1(%arg0: i32, %arg1: i32) -> (i32, i32) {
    %c0_i32 = arith.constant 0 : i32
    return %arg0, %arg1 : i32, i32
  }
  func.func @transform_2(%arg0: i32, %arg1: i32) -> (i32, i32) {
    %c0_i32 = arith.constant 0 : i32
    return %arg0, %arg1 : i32, i32
  }
}

</mosaic_0001>

<llo_original>
// kernel: tpu_custom_call.1
$region0: #{tpu_custom_call.1}
  #allocation0 [shape = 'u32[]', space=smem, size = 0x4, offset = 0x4, fixed_abs, tag = 'smem constant byte address 0x4 - core index']
  #allocation1 [shape = 'u32[72,128]{1,0:T(1,128)}', space=vmem, size = 0x9000, scoped, tag = 'internal scratch']
  %s0 = inlined_call_operand.vmem [shape: f32[8,2], index: 0, kind: input, shape index: {}]
  %s1 = inlined_call_operand.hbm [shape: f32[8,256], index: 1, kind: input, shape index: {}]
  %s2 = inlined_call_operand.hbm [shape: f32[8,256], index: 2, kind: output, shape index: {}]
  %s3 = sld [smem:[#allocation0]]
  $region45: #{tpu_custom_call.1} parent=0
    _
  %s5 = ssub.s32 1, %s3
  %s6 = scalar_select 0, %s5, %s3
  $region1: #{tpu_custom_call.1} parent=0
    #allocation2 [shape = 'u8[8192]{0}', space=vmem, size = 0x2000, scoped, tag = 'input window, operand 1']
    #allocation3 [shape = 's32[2]{0}', space=sflag, size = 0x8, scoped, tag = 'scoped memory for tpu_custom_call.1']
    #allocation4 [shape = 's32[2]{0}', space=sflag, size = 0x8, scoped, tag = 'scoped memory for tpu_custom_call.1']
    #allocation5 [shape = 'u8[8192]{0}', space=vmem, size = 0x2000, scoped, tag = 'output window, operand 0']
    %7 = vsyncpa [#allocation3], 0
    %s8 = scalar_lea.sflag [#allocation3], 1
    %9 = vsyncpa %s8, 0
    %10 = vsyncpa [#allocation4], 0
    %s11 = scalar_lea.sflag [#allocation4], 1
    %12 = vsyncpa %s11, 0
    loop: start=0, step=1, limit=4
    $region2: #{tpu_custom_call.1} parent=1 // loop_pre_header
      _
    $region3: #{tpu_custom_call.1} parent=1 // loop_header
      %s14 = sphi 0, %s18
      %p15 = scmp.ge.s32.totalorder %s14, 4
      %s21 = sphi 0, %s33
      %s22 = sphi 0, %s29
      %s23 = sphi 0, %s21
      %s24 = sphi 0, %s22
      %s25 = sphi 0, %s23
      %s26 = sphi 0, %s24
      %s36 = sphi 0, %s38
      %s39 = sphi 0, %s36
      %s40 = sphi 0, %s39
      %s56 = sphi 0, %s40
      %s64 = sphi 0, %s66
      %s67 = sphi 0, %s64
      %s68 = sphi 0, %s67
      %s84 = sphi 0, %s68
      %s92 = sphi 0, %s94
      %s95 = sphi 0, %s92
      %s96 = sphi 0, %s95
      %s112 = sphi 0, %s96
    $region4: #{tpu_custom_call.1} parent=1 // loop_header_branch
      %17 = sbr.rel (%p15) target = $region8
    $region5: #{tpu_custom_call.1} parent=1 // loop_body
      %s19 = ssub.s32 %s14, 1
      %s20 = ssub.s32 %s14, 2
      %s27 = sadd.s32 1, %s22
      %p28 = scmp.ge.s32.totalorder %s27, 2
      %s29 = scalar_select %p28, 0, %s27
      %s30 = sadd.s32 1, %s21
      %s31 = scalar_select %p28, %s30, %s21
      %p32 = scmp.ge.s32.totalorder %s31, 1
      %s33 = scalar_select %p32, 0, %s31
      %s34 = ssub.s32 %s21, %s33
      %p35 = scmp.eq.s32.totalorder %s34, 0
      %s37 = sadd.s32 %s36, 1
      %s38 = scalar_select %p35, %s36, %s37
      %p41 = pneg %p35
      %p42 = scmp.eq.s32.totalorder %s14, 1
      %p43 = por %p41, %p42
      %p44 = scmp.ne.s32.totalorder %s36, %s39
      %p45 = scmp.eq.s32.totalorder %s14, 0
      %p46 = por %p44, %p45
      %p47 = scmp.ne.s32.totalorder %s36, %s39
      %p48 = scmp.eq.s32.totalorder %s19, 1
      %p49 = por %p47, %p48
      %p50 = scmp.ne.s32.totalorder %s39, %s40
      %p51 = scmp.eq.s32.totalorder %s19, 0
      %p52 = por %p50, %p51
      %p53 = scmp.ne.s32.totalorder %s39, %s40
      %p54 = scmp.eq.s32.totalorder %s20, 1
      %p55 = por %p53, %p54
      %p57 = scmp.ne.s32.totalorder %s40, %s56
      %p58 = scmp.eq.s32.totalorder %s20, 0
      %p59 = por %p57, %p58
      %s60 = ssub.s32 %s21, %s33
      %s61 = ssub.s32 %s22, %s29
      %s62 = sor.u32 %s60, %s61
      %p63 = scmp.eq.s32.totalorder %s62, 0
      %s65 = sadd.s32 %s64, 1
      %s66 = scalar_select %p63, %s64, %s65
      %p69 = pneg %p63
      %p70 = scmp.eq.s32.totalorder %s14, 1
      %p71 = por %p69, %p70
      %p72 = scmp.ne.s32.totalorder %s64, %s67
      %p73 = scmp.eq.s32.totalorder %s14, 0
      %p74 = por %p72, %p73
      %p75 = scmp.ne.s32.totalorder %s64, %s67
      %p76 = scmp.eq.s32.totalorder %s19, 1
      %p77 = por %p75, %p76
      %p78 = scmp.ne.s32.totalorder %s67, %s68
      %p79 = scmp.eq.s32.totalorder %s19, 0
      %p80 = por %p78, %p79
      %p81 = scmp.ne.s32.totalorder %s67, %s68
      %p82 = scmp.eq.s32.totalorder %s20, 1
      %p83 = por %p81, %p82
      %p85 = scmp.ne.s32.totalorder %s68, %s84
      %p86 = scmp.eq.s32.totalorder %s20, 0
      %p87 = por %p85, %p86
      %s88 = ssub.s32 %s21, %s33
      %s89 = ssub.s32 %s22, %s29
      %s90 = sor.u32 %s88, %s89
      %p91 = scmp.eq.s32.totalorder %s90, 0
      %s93 = sadd.s32 %s92, 1
      %s94 = scalar_select %p91, %s92, %s93
      %p97 = pneg %p91
      %p98 = scmp.eq.s32.totalorder %s14, 1
      %p99 = por %p97, %p98
      %p100 = scmp.ne.s32.totalorder %s92, %s95
      %p101 = scmp.eq.s32.totalorder %s14, 0
      %p102 = por %p100, %p101
      %p103 = scmp.ne.s32.totalorder %s92, %s95
      %p104 = scmp.eq.s32.totalorder %s19, 1
      %p105 = por %p103, %p104
      %p106 = scmp.ne.s32.totalorder %s95, %s96
      %p107 = scmp.eq.s32.totalorder %s19, 0
      %p108 = por %p106, %p107
      %p109 = scmp.ne.s32.totalorder %s95, %s96
      %p110 = scmp.eq.s32.totalorder %s20, 1
      %p111 = por %p109, %p110
      %p113 = scmp.ne.s32.totalorder %s96, %s112
      %p114 = scmp.eq.s32.totalorder %s20, 0
      %p115 = por %p113, %p114
      %p116 = scmp.le.s32.totalorder 1, %s14
      %p117 = scmp.lt.s32.totalorder %s14, 3
      %p118 = pnand %p116, %p117
      %p119 = pneg %p118
      // Predicated region
      $region9: #{tpu_custom_call.1} parent=5 // pred_check
        _
      $region10: #{tpu_custom_call.1} parent=5 // pred_check_branch
        %121 = sbr.rel (%p118) target = $region12
      $region11: #{tpu_custom_call.1} parent=5 // pred_region
        %s122 = ssub.s32 %s14, 1
        // Predicated region
        $region13: #{tpu_custom_call.1} parent=11 // pred_check
          %p123 = pneg %p52
        $region14: #{tpu_custom_call.1} parent=11 // pred_check_branch
          %125 = sbr.rel (%p123) target = $region16
        $region15: #{tpu_custom_call.1} parent=11 // pred_region
          %p126 = scmp.lt.s32.totalorder %s23, 0
          %s127 = scalar_select %p126, %s23, 0
          %s128 = smul.addr %s127, 8
          %s129 = scalar_lea.vmem %s0, %s128
        $region16: #{tpu_custom_call.1} parent=11 // pred_fallthru
          _
      $region12: #{tpu_custom_call.1} parent=5 // pred_fallthru
        _
      %p130 = scmp.lt.s32.totalorder %s14, 2
      // Predicated region
      $region17: #{tpu_custom_call.1} parent=5 // pred_check
        %p131 = pneg %p130
      $region18: #{tpu_custom_call.1} parent=5 // pred_check_branch
        %133 = sbr.rel (%p131) target = $region20
      $region19: #{tpu_custom_call.1} parent=5 // pred_region
        // Predicated region
        $region21: #{tpu_custom_call.1} parent=19 // pred_check
          %p134 = pneg %p74
        $region22: #{tpu_custom_call.1} parent=19 // pred_check_branch
          %136 = sbr.rel (%p134) target = $region24
        $region23: #{tpu_custom_call.1} parent=19 // pred_region
          %s137 = sand.u32 %s64, 1
          %s138 = scalar_lea.sflag [#allocation3], %s137
          %s139 = sand.u32 %s64, 1
          %s140 = smul.addr %s139, 8
          %s141 = scalar_lea.vmem [#allocation2], %s140
          %143 = vsyncadd %s138, 0
          %s144 = smul.addr %s21, 2
          %s145 = sadd.s32 %s22, %s144
          %s146 = smul.addr %s145, 8
          %s147 = scalar_lea.hbm %s1, %s146
          %s149 = sshll.u32 %s147, 4
          %s150 = int_to_ptr.hbm [resolvable:$true] %s149
          %s151 = sshll.u32 %s141, 4
          %s152 = int_to_ptr.vmem [resolvable:$true] %s151
          %154 = dma.hbm_to_vmem [thread:$0]  %s150, 128, %s152, %s138
        $region24: #{tpu_custom_call.1} parent=19 // pred_fallthru
          _
      $region20: #{tpu_custom_call.1} parent=5 // pred_fallthru
        _
      %p155 = scmp.le.s32.totalorder 1, %s14
      %p156 = scmp.lt.s32.totalorder %s14, 3
      %p157 = pnand %p155, %p156
      %p158 = pneg %p157
      // Predicated region
      $region25: #{tpu_custom_call.1} parent=5 // pred_check
        _
      $region26: #{tpu_custom_call.1} parent=5 // pred_check_branch
        %160 = sbr.rel (%p157) target = $region28
      $region27: #{tpu_custom_call.1} parent=5 // pred_region
        %s161 = ssub.s32 %s14, 1
        %s162 = sand.u32 %s67, 1
        %s163 = scalar_lea.sflag [#allocation3], %s162
        %s164 = sand.u32 %s67, 1
        %s165 = smul.addr %s164, 8
        %s166 = scalar_lea.vmem [#allocation2], %s165
        // Predicated region
        $region29: #{tpu_custom_call.1} parent=27 // pred_check
          %p167 = pneg %p80
        $region30: #{tpu_custom_call.1} parent=27 // pred_check_branch
          %169 = sbr.rel (%p167) target = $region32
        $region31: #{tpu_custom_call.1} parent=27 // pred_region
          %171 = dma.done %s163, 128
        $region32: #{tpu_custom_call.1} parent=27 // pred_fallthru
          _
        %p172 = scmp.lt.s32.totalorder %s23, 0
        %s173 = scalar_select %p172, %s23, 0
        %s174 = smul.addr %s173, 8
        %s175 = scalar_lea.vmem %s0, %s174
        %p176 = pneg %p52
        %p177 = pneg %p49
        %s178 = sand.u32 %s67, 1
        %s179 = scalar_lea.sflag [#allocation3], %s178
        %s180 = sand.u32 %s67, 1
        %s181 = smul.addr %s180, 8
        %s182 = scalar_lea.vmem [#allocation2], %s181
        %p183 = pneg %p80
        %p184 = pneg %p77
        %p185 = pneg %p108
        %p186 = pneg %p105
        %s187 = sand.u32 %s95, 1
        %s188 = scalar_lea.sflag [#allocation4], %s187
        %s189 = sand.u32 %s95, 1
        %s190 = smul.addr %s189, 8
        %s191 = scalar_lea.vmem [#allocation5], %s190
        %p192 = scmp.lt.s32.totalorder %s23, 0
        %s193 = scalar_select %p192, %s23, 0
        %s194 = smul.addr %s193, 8
        %s195 = scalar_lea.vmem %s0, %s194
        %v196 = vld [vmem:[%s195] sm:$0xff]
        %v197 = vld [vmem:[%s166] sm:$0xff]
        %199 = vset.pattern.permute.xlu0 0
        %200 = vperm.xlu0 %199, %v196
        %v201 = vpop.permute.xlu0 %200
        %v203 = vmul.f32 %v197, %v201
        %204 = vset.pattern.permute.xlu0 1
        %205 = vperm.xlu0 %204, %v196
        %v206 = vpop.permute.xlu0 %205
        %v208 = vadd.f32 %v203, %v206
        %v209 = vmax.f32 %v208, 0.0
        %v210 = vmin.f32 %v209, 1.0
        %211 = vst [vmem:[%s191] sm:$0xff] %v210
        %s212 = sand.u32 %s95, 1
        %s213 = scalar_lea.sflag [#allocation4], %s212
        %s214 = sand.u32 %s95, 1
        %s215 = smul.addr %s214, 8
        %s216 = scalar_lea.vmem [#allocation5], %s215
        // Predicated region
        $region33: #{tpu_custom_call.1} parent=27 // pred_check
          %p217 = pneg %p105
        $region34: #{tpu_custom_call.1} parent=27 // pred_check_branch
          %219 = sbr.rel (%p217) target = $region36
        $region35: #{tpu_custom_call.1} parent=27 // pred_region
          %221 = vsyncadd %s213, 0
          %s222 = smul.addr %s23, 2
          %s223 = sadd.s32 %s24, %s222
          %s224 = smul.addr %s223, 8
          %s225 = scalar_lea.hbm %s2, %s224
          %s227 = sshll.u32 %s216, 4
          %s228 = int_to_ptr.vmem [resolvable:$true] %s227
          %s229 = sshll.u32 %s225, 4
          %s230 = int_to_ptr.hbm [resolvable:$true] %s229
          %232 = dma.vmem_to_hbm [thread:$0]  %s228, 128, %s230, %s213
        $region36: #{tpu_custom_call.1} parent=27 // pred_fallthru
          _
      $region28: #{tpu_custom_call.1} parent=5 // pred_fallthru
        _
      %p233 = scmp.le.s32.totalorder 2, %s14
      // Predicated region
      $region37: #{tpu_custom_call.1} parent=5 // pred_check
        %p234 = pneg %p233
      $region38: #{tpu_custom_call.1} parent=5 // pred_check_branch
        %236 = sbr.rel (%p234) target = $region40
      $region39: #{tpu_custom_call.1} parent=5 // pred_region
        %s237 = ssub.s32 %s14, 2
        // Predicated region
        $region41: #{tpu_custom_call.1} parent=39 // pred_check
          %p238 = pneg %p111
        $region42: #{tpu_custom_call.1} parent=39 // pred_check_branch
          %240 = sbr.rel (%p238) target = $region44
        $region43: #{tpu_custom_call.1} parent=39 // pred_region
          %s241 = sand.u32 %s96, 1
          %s242 = scalar_lea.sflag [#allocation4], %s241
          %s243 = sand.u32 %s96, 1
          %s244 = smul.addr %s243, 8
          %s245 = scalar_lea.vmem [#allocation5], %s244
          %247 = dma.done %s242, 128
        $region44: #{tpu_custom_call.1} parent=39 // pred_fallthru
          _
      $region40: #{tpu_custom_call.1} parent=5 // pred_fallthru
        _
    $region6: #{tpu_custom_call.1} parent=1 // loop_footer
      %s18 = sadd.s32 1, %s14
    $region7: #{tpu_custom_call.1} parent=1 // loop_footer_branch
      %13 = sbr.rel target = $region3
    $region8: #{tpu_custom_call.1} parent=1 // loop_exit
      _
    %248 = vsyncpa [#allocation3], 1
    %s249 = scalar_lea.sflag [#allocation3], 1
    %250 = vsyncpa %s249, 1
    %251 = vsyncpa [#allocation4], 1
    %s252 = scalar_lea.sflag [#allocation4], 1
    %253 = vsyncpa %s252, 1

</llo_original>
